<compile_context>
chip_gen: v6e
topology: v6e:2x2x1
jax: 0.10.0
libtpu: 0.0.40
codegen_flags: <defaults>
</compile_context>

<pallas_src>
import jax
import jax.numpy as jnp
from jax.experimental import pallas as pl
from jax.experimental.pallas import tpu as pltpu


def _mog_kernel(noise_ref, std_ref, mean_ref, out_ref):
    # Elementwise affine on a (TB, D) tile; std/mean are (1, D) and broadcast
    # over the batch (sublane) axis.
    out_ref[...] = noise_ref[...] * std_ref[...] + mean_ref[...]


def mog_forward(noise, std, mean, *, tb=1024):
    """MoG forward pass: noise * std + mean.

    noise: (B, D) float32
    std:   (D,)   float32 parameter
    mean:  (D,)   float32 parameter
    tb:    batch tile size (rows per grid step). Default 1024 rows keeps a
           D=128 f32 tile at 512 KiB, comfortably double-buffered inside the
           default scoped VMEM limit on v5e/v6e/v7x.
    """
    B, D = noise.shape
    std2 = std.reshape(1, D).astype(noise.dtype)
    mean2 = mean.reshape(1, D).astype(noise.dtype)

    # Choose the batch tile: no larger than B, and a multiple of 8 (sublane
    # granularity) whenever possible. If TB does not divide B, pad the batch.
    tb = min(tb, B)
    if tb >= 8:
        tb = (tb // 8) * 8
    n_blocks = pl.cdiv(B, tb)
    Bp = n_blocks * tb
    noise_p = jnp.pad(noise, ((0, Bp - B), (0, 0))) if Bp != B else noise

    out = pl.pallas_call(
        _mog_kernel,
        out_shape=jax.ShapeDtypeStruct((Bp, D), noise.dtype),
        grid=(n_blocks,),
        in_specs=[
            # Batch-tiled noise: one (tb, D) tile per grid step.
            pl.BlockSpec((tb, D), lambda i: (i, 0)),
            # std/mean: constant block index -> fetched once, stay VMEM-resident.
            pl.BlockSpec((1, D), lambda i: (0, 0)),
            pl.BlockSpec((1, D), lambda i: (0, 0)),
        ],
        out_specs=pl.BlockSpec((tb, D), lambda i: (i, 0)),
        compiler_params=pltpu.CompilerParams(
            dimension_semantics=("parallel",),
        ),
    )(noise_p, std2, mean2)

    return out[:B] if Bp != B else out


if __name__ == "__main__":
    noise_dim = 128
    batch = 256  # small, but >1 grid step with tb=128 to exercise the pipeline

    key = jax.random.PRNGKey(0)
    k_noise, k_std, k_mean = jax.random.split(key, 3)

    # Deterministic parameter init, matching torch.nn.init.uniform_ ranges.
    std = jax.random.uniform(k_std, (noise_dim,), jnp.float32, minval=-0.2, maxval=0.2)
    mean = jax.random.uniform(k_mean, (noise_dim,), jnp.float32, minval=-1.0, maxval=1.0)

    noise = jax.random.normal(k_noise, (batch, noise_dim), jnp.float32)

    # tb=128 -> grid=(2,) at this small demo size; production sizes use the
    # default tb=1024 for near-roofline HBM bandwidth.
    out = mog_forward(noise, std, mean, tb=128)
    jax.block_until_ready(out)

    # Reference check (plain JAX) to validate semantics.
    ref = noise * std[None, :] + mean[None, :]
    assert out.shape == (batch, noise_dim)
    assert jnp.allclose(out, ref, atol=1e-6, rtol=1e-6)

    # TODO(synk): if MoG is only used as a sampler, fuse the Gaussian noise
    # generation on-chip (pltpu.prng_seed + pltpu.prng_random_bits) to halve
    # HBM traffic; kept as an external input here to match the PyTorch forward.

    print("KERNEL_OK")
</pallas_src>

<mosaic_0001>
module attributes {stable_mosaic.version = 11 : i64} {
  func.func @_mog_kernel(%arg0: i32, %arg1: memref<128x128xf32, #tpu.memory_space<vmem>>, %arg2: memref<1x128xf32, #tpu.memory_space<vmem>>, %arg3: memref<1x128xf32, #tpu.memory_space<vmem>>, %arg4: memref<128x128xf32, #tpu.memory_space<vmem>>) attributes {dimension_semantics = [#tpu.dimension_semantics<parallel>], iteration_bounds = array<i64: 2>, scalar_prefetch = 0 : i64, scratch_operands = 0 : i64, tpu.core_type = #tpu.core_type<tc>, window_params = [{transform_indices = @transform_0, window_bounds = array<i64: 128, 128>}, {pipeline_mode = #tpu.pipeline_mode<synchronous>, transform_indices = @transform_1, window_bounds = array<i64: 1, 128>}, {pipeline_mode = #tpu.pipeline_mode<synchronous>, transform_indices = @transform_2, window_bounds = array<i64: 1, 128>}, {transform_indices = @transform_3, window_bounds = array<i64: 128, 128>}]} {
    %c0 = arith.constant 0 : index
    %c0_0 = arith.constant 0 : index
    %0 = vector.load %arg1[%c0, %c0_0] : memref<128x128xf32, #tpu.memory_space<vmem>>, vector<128x128xf32>
    %c0_1 = arith.constant 0 : index
    %c0_2 = arith.constant 0 : index
    %1 = vector.load %arg2[%c0_1, %c0_2] : memref<1x128xf32, #tpu.memory_space<vmem>>, vector<1x128xf32>
    %2 = vector.broadcast %1 : vector<1x128xf32> to vector<128x128xf32>
    %3 = arith.mulf %0, %2 : vector<128x128xf32>
    %c0_3 = arith.constant 0 : index
    %c0_4 = arith.constant 0 : index
    %4 = vector.load %arg3[%c0_3, %c0_4] : memref<1x128xf32, #tpu.memory_space<vmem>>, vector<1x128xf32>
    %5 = vector.broadcast %4 : vector<1x128xf32> to vector<128x128xf32>
    %6 = arith.addf %3, %5 : vector<128x128xf32>
    %c0_5 = arith.constant 0 : index
    %c0_6 = arith.constant 0 : index
    %7 = vector.load %arg4[%c0_5, %c0_6] : memref<128x128xf32, #tpu.memory_space<vmem>>, vector<128x128xf32>
    tpu.vector_store %arg4[%c0_5, %c0_6], %6 {strides = array<i32>} : memref<128x128xf32, #tpu.memory_space<vmem>>, vector<128x128xf32>,
    return
  }
  func.func @transform_0(%arg0: i32) -> (i32, i32) {
    %c0_i32 = arith.constant 0 : i32
    %c0_i32_0 = arith.constant 0 : i32
    return %arg0, %c0_i32 : i32, i32
  }
  func.func @transform_1(%arg0: i32) -> (i32, i32) {
    %c0_i32 = arith.constant 0 : i32
    %c0_i32_0 = arith.constant 0 : i32
    %c0_i32_1 = arith.constant 0 : i32
    return %c0_i32, %c0_i32_0 : i32, i32
  }
  func.func @transform_2(%arg0: i32) -> (i32, i32) {
    %c0_i32 = arith.constant 0 : i32
    %c0_i32_0 = arith.constant 0 : i32
    %c0_i32_1 = arith.constant 0 : i32
    return %c0_i32, %c0_i32_0 : i32, i32
  }
  func.func @transform_3(%arg0: i32) -> (i32, i32) {
    %c0_i32 = arith.constant 0 : i32
    %c0_i32_0 = arith.constant 0 : i32
    return %arg0, %c0_i32 : i32, i32
  }
}

</mosaic_0001>

<llo_original>
// kernel: tpu_custom_call.1
$region0: #{tpu_custom_call.1}
  #allocation0 [shape = 'u32[]', space=smem, size = 0x4, offset = 0x4, fixed_abs, tag = 'smem constant byte address 0x4 - core index']
  #allocation1 [shape = 'u32[144,128]{1,0:T(1,128)}', space=vmem, size = 0x12000, scoped, tag = 'internal scratch']
  %s0 = inlined_call_operand.hbm [shape: f32[256,128], index: 0, kind: input, shape index: {}]
  %s1 = inlined_call_operand.vmem [shape: f32[1,128], index: 1, kind: input, shape index: {}]
  %s2 = inlined_call_operand.vmem [shape: f32[1,128], index: 2, kind: input, shape index: {}]
  %s3 = inlined_call_operand.hbm [shape: f32[256,128], index: 3, kind: output, shape index: {}]
  %s4 = sld [smem:[#allocation0]]
  $region49: #{tpu_custom_call.1} parent=0
    _
  %s6 = ssub.s32 1, %s4
  %s7 = scalar_select 0, %s6, %s4
  $region1: #{tpu_custom_call.1} parent=0
    #allocation2 [shape = 'u8[131072]{0}', space=vmem, size = 0x20000, scoped, tag = 'input window, operand 0']
    #allocation3 [shape = 's32[2]{0}', space=sflag, size = 0x8, scoped, tag = 'scoped memory for tpu_custom_call.1']
    #allocation4 [shape = 's32[2]{0}', space=sflag, size = 0x8, scoped, tag = 'scoped memory for tpu_custom_call.1']
    #allocation5 [shape = 'u8[131072]{0}', space=vmem, size = 0x20000, scoped, tag = 'output window, operand 0']
    %8 = vsyncpa [#allocation3], 0
    %s9 = scalar_lea.sflag [#allocation3], 1
    %10 = vsyncpa %s9, 0
    %11 = vsyncpa [#allocation4], 0
    %s12 = scalar_lea.sflag [#allocation4], 1
    %13 = vsyncpa %s12, 0
    loop: start=0, step=1, limit=4
    $region2: #{tpu_custom_call.1} parent=1 // loop_pre_header
      _
    $region3: #{tpu_custom_call.1} parent=1 // loop_header
      %s15 = sphi 0, %s19
      %p16 = scmp.ge.s32.totalorder %s15, 4
      %s25 = sphi 0, %s27
      %s28 = sphi 0, %s25
      %s29 = sphi 0, %s28
      %s45 = sphi 0, %s29
      %s49 = sphi 0, %s49
      %s51 = sphi 0, %s49
      %s52 = sphi 0, %s51
      %s66 = sphi 0, %s52
      %s70 = sphi 0, %s70
      %s72 = sphi 0, %s70
      %s73 = sphi 0, %s72
      %s87 = sphi 0, %s73
      %s93 = sphi 0, %s95
      %s96 = sphi 0, %s93
      %s97 = sphi 0, %s96
      %s113 = sphi 0, %s97
    $region4: #{tpu_custom_call.1} parent=1 // loop_header_branch
      %18 = sbr.rel (%p16) target = $region8
    $region5: #{tpu_custom_call.1} parent=1 // loop_body
      %s20 = ssub.s32 %s15, 1
      %s21 = ssub.s32 %s15, 2
      %s22 = sadd.s32 %s15, 1
      %s23 = ssub.s32 %s15, %s22
      %p24 = scmp.eq.s32.totalorder %s23, 0
      %s26 = sadd.s32 %s25, 1
      %s27 = scalar_select %p24, %s25, %s26
      %p30 = pneg %p24
      %p31 = scmp.eq.s32.totalorder %s15, 1
      %p32 = por %p30, %p31
      %p33 = scmp.ne.s32.totalorder %s25, %s28
      %p34 = scmp.eq.s32.totalorder %s15, 0
      %p35 = por %p33, %p34
      %p36 = scmp.ne.s32.totalorder %s25, %s28
      %p37 = scmp.eq.s32.totalorder %s20, 1
      %p38 = por %p36, %p37
      %p39 = scmp.ne.s32.totalorder %s28, %s29
      %p40 = scmp.eq.s32.totalorder %s20, 0
      %p41 = por %p39, %p40
      %p42 = scmp.ne.s32.totalorder %s28, %s29
      %p43 = scmp.eq.s32.totalorder %s21, 1
      %p44 = por %p42, %p43
      %p46 = scmp.ne.s32.totalorder %s29, %s45
      %p47 = scmp.eq.s32.totalorder %s21, 0
      %p48 = por %p46, %p47
      %s50 = sadd.s32 %s49, 1
      %p53 = scmp.eq.s32.totalorder %s15, 1
      %p54 = scmp.ne.s32.totalorder %s49, %s51
      %p55 = scmp.eq.s32.totalorder %s15, 0
      %p56 = por %p54, %p55
      %p57 = scmp.ne.s32.totalorder %s49, %s51
      %p58 = scmp.eq.s32.totalorder %s20, 1
      %p59 = por %p57, %p58
      %p60 = scmp.ne.s32.totalorder %s51, %s52
      %p61 = scmp.eq.s32.totalorder %s20, 0
      %p62 = por %p60, %p61
      %p63 = scmp.ne.s32.totalorder %s51, %s52
      %p64 = scmp.eq.s32.totalorder %s21, 1
      %p65 = por %p63, %p64
      %p67 = scmp.ne.s32.totalorder %s52, %s66
      %p68 = scmp.eq.s32.totalorder %s21, 0
      %p69 = por %p67, %p68
      %s71 = sadd.s32 %s70, 1
      %p74 = scmp.eq.s32.totalorder %s15, 1
      %p75 = scmp.ne.s32.totalorder %s70, %s72
      %p76 = scmp.eq.s32.totalorder %s15, 0
      %p77 = por %p75, %p76
      %p78 = scmp.ne.s32.totalorder %s70, %s72
      %p79 = scmp.eq.s32.totalorder %s20, 1
      %p80 = por %p78, %p79
      %p81 = scmp.ne.s32.totalorder %s72, %s73
      %p82 = scmp.eq.s32.totalorder %s20, 0
      %p83 = por %p81, %p82
      %p84 = scmp.ne.s32.totalorder %s72, %s73
      %p85 = scmp.eq.s32.totalorder %s21, 1
      %p86 = por %p84, %p85
      %p88 = scmp.ne.s32.totalorder %s73, %s87
      %p89 = scmp.eq.s32.totalorder %s21, 0
      %p90 = por %p88, %p89
      %s91 = ssub.s32 %s15, %s22
      %p92 = scmp.eq.s32.totalorder %s91, 0
      %s94 = sadd.s32 %s93, 1
      %s95 = scalar_select %p92, %s93, %s94
      %p98 = pneg %p92
      %p99 = scmp.eq.s32.totalorder %s15, 1
      %p100 = por %p98, %p99
      %p101 = scmp.ne.s32.totalorder %s93, %s96
      %p102 = scmp.eq.s32.totalorder %s15, 0
      %p103 = por %p101, %p102
      %p104 = scmp.ne.s32.totalorder %s93, %s96
      %p105 = scmp.eq.s32.totalorder %s20, 1
      %p106 = por %p104, %p105
      %p107 = scmp.ne.s32.totalorder %s96, %s97
      %p108 = scmp.eq.s32.totalorder %s20, 0
      %p109 = por %p107, %p108
      %p110 = scmp.ne.s32.totalorder %s96, %s97
      %p111 = scmp.eq.s32.totalorder %s21, 1
      %p112 = por %p110, %p111
      %p114 = scmp.ne.s32.totalorder %s97, %s113
      %p115 = scmp.eq.s32.totalorder %s21, 0
      %p116 = por %p114, %p115
      %p117 = scmp.le.s32.totalorder 1, %s15
      %p118 = scmp.lt.s32.totalorder %s15, 3
      %p119 = pnand %p117, %p118
      %p120 = pneg %p119
      // Predicated region
      $region9: #{tpu_custom_call.1} parent=5 // pred_check
        _
      $region10: #{tpu_custom_call.1} parent=5 // pred_check_branch
        %122 = sbr.rel (%p119) target = $region12
      $region11: #{tpu_custom_call.1} parent=5 // pred_region
        %s123 = ssub.s32 %s15, 1
        // Predicated region
        $region13: #{tpu_custom_call.1} parent=11 // pred_check
          %p124 = pneg %p62
        $region14: #{tpu_custom_call.1} parent=11 // pred_check_branch
          %126 = sbr.rel (%p124) target = $region16
        $region15: #{tpu_custom_call.1} parent=11 // pred_region
          _
        $region16: #{tpu_custom_call.1} parent=11 // pred_fallthru
          _
        // Predicated region
        $region17: #{tpu_custom_call.1} parent=11 // pred_check
          %p127 = pneg %p83
        $region18: #{tpu_custom_call.1} parent=11 // pred_check_branch
          %129 = sbr.rel (%p127) target = $region20
        $region19: #{tpu_custom_call.1} parent=11 // pred_region
          _
        $region20: #{tpu_custom_call.1} parent=11 // pred_fallthru
          _
      $region12: #{tpu_custom_call.1} parent=5 // pred_fallthru
        _
      %p130 = scmp.lt.s32.totalorder %s15, 2
      // Predicated region
      $region21: #{tpu_custom_call.1} parent=5 // pred_check
        %p131 = pneg %p130
      $region22: #{tpu_custom_call.1} parent=5 // pred_check_branch
        %133 = sbr.rel (%p131) target = $region24
      $region23: #{tpu_custom_call.1} parent=5 // pred_region
        // Predicated region
        $region25: #{tpu_custom_call.1} parent=23 // pred_check
          %p134 = pneg %p35
        $region26: #{tpu_custom_call.1} parent=23 // pred_check_branch
          %136 = sbr.rel (%p134) target = $region28
        $region27: #{tpu_custom_call.1} parent=23 // pred_region
          %s137 = sand.u32 %s25, 1
          %s138 = scalar_lea.sflag [#allocation3], %s137
          %s139 = sand.u32 %s25, 1
          %s140 = smul.addr %s139, 128
          %s141 = scalar_lea.vmem [#allocation2], %s140
          %s142 = smul.u32 16, %s15
          %s144 = ssub.s32 2048, 2048
          %145 = vsyncadd %s138, %s144
          %s146 = smul.addr %s142, 128
          %s147 = scalar_lea.hbm %s0, %s146
          %s148 = sshll.u32 %s141, 4
          %s149 = int_to_ptr.vmem [resolvable:$true] %s148
          %154 = dma.hbm_to_vmem [thread:$0]  %s147, 2048, %s149, %s138, 128, 128, 8
        $region28: #{tpu_custom_call.1} parent=23 // pred_fallthru
          _
      $region24: #{tpu_custom_call.1} parent=5 // pred_fallthru
        _
      %p155 = scmp.le.s32.totalorder 1, %s15
      %p156 = scmp.lt.s32.totalorder %s15, 3
      %p157 = pnand %p155, %p156
      %p158 = pneg %p157
      // Predicated region
      $region29: #{tpu_custom_call.1} parent=5 // pred_check
        _
      $region30: #{tpu_custom_call.1} parent=5 // pred_check_branch
        %160 = sbr.rel (%p157) target = $region32
      $region31: #{tpu_custom_call.1} parent=5 // pred_region
        %s161 = ssub.s32 %s15, 1
        %s162 = sand.u32 %s28, 1
        %s163 = scalar_lea.sflag [#allocation3], %s162
        %s164 = sand.u32 %s28, 1
        %s165 = smul.addr %s164, 128
        %s166 = scalar_lea.vmem [#allocation2], %s165
        // Predicated region
        $region33: #{tpu_custom_call.1} parent=31 // pred_check
          %p167 = pneg %p41
        $region34: #{tpu_custom_call.1} parent=31 // pred_check_branch
          %169 = sbr.rel (%p167) target = $region36
        $region35: #{tpu_custom_call.1} parent=31 // pred_region
          %170 = dma.done %s163, 2048
        $region36: #{tpu_custom_call.1} parent=31 // pred_fallthru
          _
        %s171 = sand.u32 %s28, 1
        %s172 = scalar_lea.sflag [#allocation3], %s171
        %s173 = sand.u32 %s28, 1
        %s174 = smul.addr %s173, 128
        %s175 = scalar_lea.vmem [#allocation2], %s174
        %p176 = pneg %p41
        %p177 = pneg %p38
        %p178 = pneg %p62
        %p179 = pneg %p59
        %p180 = pneg %p83
        %p181 = pneg %p80
        %p182 = pneg %p109
        %p183 = pneg %p106
        %s184 = sand.u32 %s96, 1
        %s185 = scalar_lea.sflag [#allocation4], %s184
        %s186 = sand.u32 %s96, 1
        %s187 = smul.addr %s186, 128
        %s188 = scalar_lea.vmem [#allocation5], %s187
        %s189 = smul.u32 16, %s20
        %s190 = smul.u32 16, %s20
        %v191 = vld [vmem:[%s166] sm:$0xff]
        %v192 = vld [vmem:[%s166 + $0x8] sm:$0xff]
        %v193 = vld [vmem:[%s166 + $0x10] sm:$0xff]
        %v194 = vld [vmem:[%s166 + $0x18] sm:$0xff]
        %v195 = vld [vmem:[%s166 + $0x20] sm:$0xff]
        %v196 = vld [vmem:[%s166 + $0x28] sm:$0xff]
        %v197 = vld [vmem:[%s166 + $0x30] sm:$0xff]
        %v198 = vld [vmem:[%s166 + $0x38] sm:$0xff]
        %v199 = vld [vmem:[%s166 + $0x40] sm:$0xff]
        %v200 = vld [vmem:[%s166 + $0x48] sm:$0xff]
        %v201 = vld [vmem:[%s166 + $0x50] sm:$0xff]
        %v202 = vld [vmem:[%s166 + $0x58] sm:$0xff]
        %v203 = vld [vmem:[%s166 + $0x60] sm:$0xff]
        %v204 = vld [vmem:[%s166 + $0x68] sm:$0xff]
        %v205 = vld [vmem:[%s166 + $0x70] sm:$0xff]
        %v206 = vld [vmem:[%s166 + $0x78] sm:$0xff]
        %v207 = vld [vmem:[%s1] sm:$0x1]
        %v209 = vlaneseq
        %v210 = vshrl.u32 %v209, 7
        %v211 = vsub.s32 0, %v210
        %v212 = vrot.slane %v207, %v211
        %v214 = vmul.f32 %v191, %v212
        %v215 = vmul.f32 %v192, %v212
        %v216 = vmul.f32 %v193, %v212
        %v217 = vmul.f32 %v194, %v212
        %v218 = vmul.f32 %v195, %v212
        %v219 = vmul.f32 %v196, %v212
        %v220 = vmul.f32 %v197, %v212
        %v221 = vmul.f32 %v198, %v212
        %v222 = vmul.f32 %v199, %v212
        %v223 = vmul.f32 %v200, %v212
        %v224 = vmul.f32 %v201, %v212
        %v225 = vmul.f32 %v202, %v212
        %v226 = vmul.f32 %v203, %v212
        %v227 = vmul.f32 %v204, %v212
        %v228 = vmul.f32 %v205, %v212
        %v229 = vmul.f32 %v206, %v212
        %v230 = vld [vmem:[%s2] sm:$0x1]
        %v232 = vlaneseq
        %v233 = vshrl.u32 %v232, 7
        %v234 = vsub.s32 0, %v233
        %v235 = vrot.slane %v230, %v234
        %v237 = vadd.f32 %v214, %v235
        %v238 = vadd.f32 %v215, %v235
        %v239 = vadd.f32 %v216, %v235
        %v240 = vadd.f32 %v217, %v235
        %v241 = vadd.f32 %v218, %v235
        %v242 = vadd.f32 %v219, %v235
        %v243 = vadd.f32 %v220, %v235
        %v244 = vadd.f32 %v221, %v235
        %v245 = vadd.f32 %v222, %v235
        %v246 = vadd.f32 %v223, %v235
        %v247 = vadd.f32 %v224, %v235
        %v248 = vadd.f32 %v225, %v235
        %v249 = vadd.f32 %v226, %v235
        %v250 = vadd.f32 %v227, %v235
        %v251 = vadd.f32 %v228, %v235
        %v252 = vadd.f32 %v229, %v235
        %253 = vst [vmem:[%s188] sm:$0xff] %v237
        %254 = vst [vmem:[%s188 + $0x8] sm:$0xff] %v238
        %255 = vst [vmem:[%s188 + $0x10] sm:$0xff] %v239
        %256 = vst [vmem:[%s188 + $0x18] sm:$0xff] %v240
        %257 = vst [vmem:[%s188 + $0x20] sm:$0xff] %v241
        %258 = vst [vmem:[%s188 + $0x28] sm:$0xff] %v242
        %259 = vst [vmem:[%s188 + $0x30] sm:$0xff] %v243
        %260 = vst [vmem:[%s188 + $0x38] sm:$0xff] %v244
        %261 = vst [vmem:[%s188 + $0x40] sm:$0xff] %v245
        %262 = vst [vmem:[%s188 + $0x48] sm:$0xff] %v246
        %263 = vst [vmem:[%s188 + $0x50] sm:$0xff] %v247
        %264 = vst [vmem:[%s188 + $0x58] sm:$0xff] %v248
        %265 = vst [vmem:[%s188 + $0x60] sm:$0xff] %v249
        %266 = vst [vmem:[%s188 + $0x68] sm:$0xff] %v250
        %267 = vst [vmem:[%s188 + $0x70] sm:$0xff] %v251
        %268 = vst [vmem:[%s188 + $0x78] sm:$0xff] %v252
        %s269 = sand.u32 %s96, 1
        %s270 = scalar_lea.sflag [#allocation4], %s269
        %s271 = sand.u32 %s96, 1
        %s272 = smul.addr %s271, 128
        %s273 = scalar_lea.vmem [#allocation5], %s272
        // Predicated region
        $region37: #{tpu_custom_call.1} parent=31 // pred_check
          %p274 = pneg %p106
        $region38: #{tpu_custom_call.1} parent=31 // pred_check_branch
          %276 = sbr.rel (%p274) target = $region40
        $region39: #{tpu_custom_call.1} parent=31 // pred_region
          %s277 = smul.u32 16, %s20
          %s279 = ssub.s32 2048, 2048
          %280 = vsyncadd %s270, %s279
          %s281 = smul.addr %s277, 128
          %s282 = scalar_lea.hbm %s3, %s281
          %s283 = sshll.u32 %s273, 4
          %s284 = int_to_ptr.vmem [resolvable:$true] %s283
          %289 = dma.vmem_to_hbm [thread:$0]  %s284, 2048, %s282, %s270, 128, 128, 8
        $region40: #{tpu_custom_call.1} parent=31 // pred_fallthru
          _
      $region32: #{tpu_custom_call.1} parent=5 // pred_fallthru
        _
      %p290 = scmp.le.s32.totalorder 2, %s15
      // Predicated region
      $region41: #{tpu_custom_call.1} parent=5 // pred_check
        %p291 = pneg %p290
      $region42: #{tpu_custom_call.1} parent=5 // pred_check_branch
        %293 = sbr.rel (%p291) target = $region44
      $region43: #{tpu_custom_call.1} parent=5 // pred_region
        %s294 = ssub.s32 %s15, 2
        // Predicated region
        $region45: #{tpu_custom_call.1} parent=43 // pred_check
          %p295 = pneg %p112
        $region46: #{tpu_custom_call.1} parent=43 // pred_check_branch
          %297 = sbr.rel (%p295) target = $region48
        $region47: #{tpu_custom_call.1} parent=43 // pred_region
          %s298 = sand.u32 %s97, 1
          %s299 = scalar_lea.sflag [#allocation4], %s298
          %s300 = sand.u32 %s97, 1
          %s301 = smul.addr %s300, 128
          %s302 = scalar_lea.vmem [#allocation5], %s301
          %303 = dma.done %s299, 2048
        $region48: #{tpu_custom_call.1} parent=43 // pred_fallthru
          _
      $region44: #{tpu_custom_call.1} parent=5 // pred_fallthru
        _
    $region6: #{tpu_custom_call.1} parent=1 // loop_footer
      %s19 = sadd.s32 1, %s15
    $region7: #{tpu_custom_call.1} parent=1 // loop_footer_branch
      %14 = sbr.rel target = $region3
    $region8: #{tpu_custom_call.1} parent=1 // loop_exit
      _
    %304 = vsyncpa [#allocation3], 1
    %s305 = scalar_lea.sflag [#allocation3], 1
    %306 = vsyncpa %s305, 1
    %307 = vsyncpa [#allocation4], 1
    %s308 = scalar_lea.sflag [#allocation4], 1
    %309 = vsyncpa %s308, 1

</llo_original>
